<compile_context>
chip_gen: v6e
topology: v6e:2x2x1
jax: 0.10.0
libtpu: 0.0.40
codegen_flags: <defaults>
</compile_context>

<pallas_src>
import jax
import jax.numpy as jnp
from jax.experimental import pallas as pl
from jax.experimental.pallas import tpu as pltpu

_LANES = 128            # vreg lane width; preferred last dim of every block
_TILE_BYTES = 1 << 20   # ~1 MiB (f32 terms) per input tile


def _poly2d_kernel(d: int):
    """Kernel body with the (static, non-negative) polynomial degree baked in."""

    def kernel(x_ref, w1_ref, w2_ref, o_ref):
        # Upcast once; all VPU math in f32 (matters on v5e for bf16 inputs).
        x = x_ref[...].astype(jnp.float32)
        w1 = w1_ref[...].astype(jnp.float32)
        w2 = w2_ref[...].astype(jnp.float32)

        w1sq = w1 * w1                      # reused below for w1**d
        s = w1sq + w2 * w2
        q = s * s                           # (w1^2 + w2^2)^2

        # w1**d via static exponentiation-by-squaring, seeded from w1sq.
        if d == 0:
            wpow = None
        else:
            wpow = w1 if (d & 1) else None  # odd low bit
            base = w1sq                     # = w1**2, already computed
            e = d >> 1
            while e > 0:
                if e & 1:
                    wpow = base if wpow is None else wpow * base
                e >>= 1
                if e:
                    base = base * base

        out = x * q if wpow is None else x * (q * wpow)
        o_ref[...] = out.astype(o_ref.dtype)

    return kernel


def poly_model_2d_forward(x, w1, w2, d: int):
    """out = x * (w1**2 + w2**2)**2 * w1**d, all arrays of identical shape."""
    assert x.shape == w1.shape == w2.shape
    assert d >= 0, "negative degrees not supported"
    orig_shape = x.shape
    dtype = x.dtype
    n = x.size

    # --- zero-copy re-layout ------------------------------------------------
    # Prefer a lane-dense (rows, 128) view (free reshape, unmasked vst).
    # Fallback: (rows, last_dim) view -- masked boundary stores, still no copy.
    if n % _LANES == 0:
        lanes = _LANES
    else:
        lanes = orig_shape[-1]
    rows = n // lanes

    bytes_per_row = lanes * 4
    target_rows = max(8, _TILE_BYTES // bytes_per_row)
    block_rows = min(((target_rows + 7) // 8) * 8, ((rows + 7) // 8) * 8)
    # TODO(synk): a single row larger than the VMEM budget (huge, non-128-divisible
    # last dim) could still overflow this block; not reachable for this module.

    xf, w1f, w2f = (a.reshape(rows, lanes) for a in (x, w1, w2))

    # --- tiled, pipelined pallas_call (uneven trailing block is fine) --------
    grid = (pl.cdiv(rows, block_rows),)
    spec = pl.BlockSpec((block_rows, lanes), lambda i: (i, 0))

    out = pl.pallas_call(
        _poly2d_kernel(d),
        out_shape=jax.ShapeDtypeStruct((rows, lanes), dtype),
        grid=grid,
        in_specs=[spec, spec, spec],
        out_specs=spec,
        compiler_params=pltpu.CompilerParams(
            dimension_semantics=("parallel",),       # shard rows across TCs on v7x
            vmem_limit_bytes=32 * 1024 * 1024,       # safe on v5e/v6e/v7x
        ),
    )(xf, w1f, w2f)

    return out.reshape(orig_shape)


def poly_model_2d_reference(x, w1, w2, d: int):
    q = (w1 ** 2 + w2 ** 2) ** 2 * w1 ** d
    return x * q


if __name__ == "__main__":
    # Config (deterministic, small): matches PolyModel2D.__init__ shapes.
    seed = 0
    out_features = 8
    in_features = 32
    d = 3            # odd degree exercises the exponentiation-by-squaring path
    wxm = 0.5
    wym = 0.5
    dtype = jnp.float32

    key = jax.random.PRNGKey(seed)
    k_x, k_w1, k_w2 = jax.random.split(key, 3)

    # Weights: uniform in [-wxm, wxm] / [-wym, wym], shape (out_features, in_features)
    w1 = jax.random.uniform(k_w1, (out_features, in_features), dtype,
                            minval=-wxm, maxval=wxm)
    w2 = jax.random.uniform(k_w2, (out_features, in_features), dtype,
                            minval=-wym, maxval=wym)

    # Input: (out_features, in_features) so the broadcast multiply is elementwise.
    x = jax.random.normal(k_x, (out_features, in_features), dtype)

    out = jax.block_until_ready(poly_model_2d_forward(x, w1, w2, d))
    ref = poly_model_2d_reference(x, w1, w2, d)
    assert out.shape == ref.shape
    assert jnp.allclose(out, ref, atol=1e-6, rtol=1e-6), "mismatch vs reference"

    # d=2, larger shape whose total size is 128-divisible (lane-dense fast path,
    # uneven trailing grid block).
    x2 = jax.random.normal(k_x, (100, 96), dtype)
    w1b = jax.random.uniform(k_w1, (100, 96), dtype, minval=-wxm, maxval=wxm)
    w2b = jax.random.uniform(k_w2, (100, 96), dtype, minval=-wym, maxval=wym)
    out2 = jax.block_until_ready(poly_model_2d_forward(x2, w1b, w2b, 2))
    ref2 = poly_model_2d_reference(x2, w1b, w2b, 2)
    assert jnp.allclose(out2, ref2, atol=1e-6, rtol=1e-6), "mismatch (case 2)"

    # d=0 and a total size NOT divisible by 128 (zero-copy fallback path,
    # masked boundary stores).
    x3 = jax.random.normal(k_x, (7, 33), dtype)
    w1c = jax.random.uniform(k_w1, (7, 33), dtype, minval=-wxm, maxval=wxm)
    w2c = jax.random.uniform(k_w2, (7, 33), dtype, minval=-wym, maxval=wym)
    out3 = jax.block_until_ready(poly_model_2d_forward(x3, w1c, w2c, 0))
    ref3 = poly_model_2d_reference(x3, w1c, w2c, 0)
    assert jnp.allclose(out3, ref3, atol=1e-6, rtol=1e-6), "mismatch (case 3)"

    print("KERNEL_OK")
</pallas_src>

<mosaic_0001>
module attributes {stable_mosaic.version = 11 : i64} {
  func.func @kernel(%arg0: i32, %arg1: memref<8x128xf32, #tpu.memory_space<vmem>>, %arg2: memref<8x128xf32, #tpu.memory_space<vmem>>, %arg3: memref<8x128xf32, #tpu.memory_space<vmem>>, %arg4: memref<8x128xf32, #tpu.memory_space<vmem>>) attributes {dimension_semantics = [#tpu.dimension_semantics<parallel>], iteration_bounds = array<i64: 1>, scalar_prefetch = 0 : i64, scratch_operands = 0 : i64, tpu.core_type = #tpu.core_type<tc>, window_params = [{transform_indices = @transform_0, window_bounds = array<i64: 8, 128>}, {transform_indices = @transform_1, window_bounds = array<i64: 8, 128>}, {transform_indices = @transform_2, window_bounds = array<i64: 8, 128>}, {transform_indices = @transform_3, window_bounds = array<i64: 8, 128>}]} {
    %c0 = arith.constant 0 : index
    %c0_0 = arith.constant 0 : index
    %0 = vector.load %arg1[%c0, %c0_0] : memref<8x128xf32, #tpu.memory_space<vmem>>, vector<8x128xf32>
    %c0_1 = arith.constant 0 : index
    %c0_2 = arith.constant 0 : index
    %1 = vector.load %arg2[%c0_1, %c0_2] : memref<8x128xf32, #tpu.memory_space<vmem>>, vector<8x128xf32>
    %c0_3 = arith.constant 0 : index
    %c0_4 = arith.constant 0 : index
    %2 = vector.load %arg3[%c0_3, %c0_4] : memref<8x128xf32, #tpu.memory_space<vmem>>, vector<8x128xf32>
    %3 = arith.mulf %1, %1 : vector<8x128xf32>
    %4 = arith.mulf %2, %2 : vector<8x128xf32>
    %5 = arith.addf %3, %4 : vector<8x128xf32>
    %6 = arith.mulf %5, %5 : vector<8x128xf32>
    %7 = arith.mulf %1, %3 : vector<8x128xf32>
    %8 = arith.mulf %6, %7 : vector<8x128xf32>
    %9 = arith.mulf %0, %8 : vector<8x128xf32>
    %c0_5 = arith.constant 0 : index
    %c0_6 = arith.constant 0 : index
    %10 = vector.load %arg4[%c0_5, %c0_6] : memref<8x128xf32, #tpu.memory_space<vmem>>, vector<8x128xf32>
    tpu.vector_store %arg4[%c0_5, %c0_6], %9 {strides = array<i32>} : memref<8x128xf32, #tpu.memory_space<vmem>>, vector<8x128xf32>,
    return
  }
  func.func @transform_0(%arg0: i32) -> (i32, i32) {
    %c0_i32 = arith.constant 0 : i32
    %c0_i32_0 = arith.constant 0 : i32
    return %arg0, %c0_i32 : i32, i32
  }
  func.func @transform_1(%arg0: i32) -> (i32, i32) {
    %c0_i32 = arith.constant 0 : i32
    %c0_i32_0 = arith.constant 0 : i32
    return %arg0, %c0_i32 : i32, i32
  }
  func.func @transform_2(%arg0: i32) -> (i32, i32) {
    %c0_i32 = arith.constant 0 : i32
    %c0_i32_0 = arith.constant 0 : i32
    return %arg0, %c0_i32 : i32, i32
  }
  func.func @transform_3(%arg0: i32) -> (i32, i32) {
    %c0_i32 = arith.constant 0 : i32
    %c0_i32_0 = arith.constant 0 : i32
    return %arg0, %c0_i32 : i32, i32
  }
}

</mosaic_0001>

<llo_original>
// kernel: tpu_custom_call.1
$region0: #{tpu_custom_call.1}
  #allocation0 [shape = 'u32[]', space=smem, size = 0x4, offset = 0x4, fixed_abs, tag = 'smem constant byte address 0x4 - core index']
  #allocation1 [shape = 'u32[144,128]{1,0:T(1,128)}', space=vmem, size = 0x12000, scoped, tag = 'internal scratch']
  %s0 = inlined_call_operand.hbm [shape: f32[2,128], index: 0, kind: input, shape index: {}]
  %s1 = inlined_call_operand.hbm [shape: f32[2,128], index: 1, kind: input, shape index: {}]
  %s2 = inlined_call_operand.vmem [shape: f32[2,128], index: 2, kind: input, shape index: {}]
  %s3 = inlined_call_operand.hbm [shape: f32[2,128], index: 3, kind: output, shape index: {}]
  %s4 = sld [smem:[#allocation0]]
  $region30: #{tpu_custom_call.1} parent=0
    _
  %s6 = ssub.s32 1, %s4
  %s7 = scalar_select 0, %s6, %s4
  $region1: #{tpu_custom_call.1} parent=0
    #allocation2 [shape = 'u8[4096]{0}', space=vmem, size = 0x1000, scoped, tag = 'input window, operand 0, single buffered']
    #allocation3 [shape = 's32[1]{0}', space=sflag, size = 0x4, scoped, tag = 'scoped memory for tpu_custom_call.1']
    #allocation4 [shape = 's32[1]{0}', space=sflag, size = 0x4, scoped, tag = 'scoped memory for tpu_custom_call.1']
    #allocation5 [shape = 'u8[4096]{0}', space=vmem, size = 0x1000, scoped, tag = 'input window, operand 1, single buffered']
    #allocation6 [shape = 's32[1]{0}', space=sflag, size = 0x4, scoped, tag = 'scoped memory for tpu_custom_call.1']
    #allocation7 [shape = 'u8[4096]{0}', space=vmem, size = 0x1000, scoped, tag = 'output window, operand 0, single buffered']
    %8 = vsyncpa [#allocation3], 0
    %9 = vsyncpa [#allocation6], 0
    %10 = vsyncpa [#allocation4], 0
    // Predicated region
    $region2: #{tpu_custom_call.1} parent=1 // pred_check
      _
    $region3: #{tpu_custom_call.1} parent=1 // pred_check_branch
      %12 = sbr.rel (0) target = $region5
    $region4: #{tpu_custom_call.1} parent=1 // pred_region
      %s14 = ssub.s32 128, 32
      %15 = vsyncadd [#allocation3], %s14
      %s16 = sshll.u32 [#allocation2], 4
      %s17 = int_to_ptr.vmem [resolvable:$true] %s16
      %22 = dma.hbm_to_vmem [thread:$0]  %s0, 32, %s17, [#allocation3], 32, 32, 2
    $region5: #{tpu_custom_call.1} parent=1 // pred_fallthru
      _
    // Predicated region
    $region6: #{tpu_custom_call.1} parent=1 // pred_check
      _
    $region7: #{tpu_custom_call.1} parent=1 // pred_check_branch
      %24 = sbr.rel (0) target = $region9
    $region8: #{tpu_custom_call.1} parent=1 // pred_region
      %s26 = ssub.s32 128, 32
      %27 = vsyncadd [#allocation6], %s26
      %s28 = sshll.u32 [#allocation5], 4
      %s29 = int_to_ptr.vmem [resolvable:$true] %s28
      %34 = dma.hbm_to_vmem [thread:$0]  %s1, 32, %s29, [#allocation6], 32, 32, 2
    $region9: #{tpu_custom_call.1} parent=1 // pred_fallthru
      _
    // Predicated region
    $region10: #{tpu_custom_call.1} parent=1 // pred_check
      _
    $region11: #{tpu_custom_call.1} parent=1 // pred_check_branch
      %36 = sbr.rel (0) target = $region13
    $region12: #{tpu_custom_call.1} parent=1 // pred_region
      _
    $region13: #{tpu_custom_call.1} parent=1 // pred_fallthru
      _
    // Predicated region
    $region14: #{tpu_custom_call.1} parent=1 // pred_check
      _
    $region15: #{tpu_custom_call.1} parent=1 // pred_check_branch
      %38 = sbr.rel (0) target = $region17
    $region16: #{tpu_custom_call.1} parent=1 // pred_region
      %39 = dma.done [#allocation3], 128
    $region17: #{tpu_custom_call.1} parent=1 // pred_fallthru
      _
    // Predicated region
    $region18: #{tpu_custom_call.1} parent=1 // pred_check
      _
    $region19: #{tpu_custom_call.1} parent=1 // pred_check_branch
      %41 = sbr.rel (0) target = $region21
    $region20: #{tpu_custom_call.1} parent=1 // pred_region
      %42 = dma.done [#allocation6], 128
    $region21: #{tpu_custom_call.1} parent=1 // pred_fallthru
      _
    %v43 = vld [vmem:[#allocation2] sm:$0xff]
    %v44 = vld [vmem:[#allocation5] sm:$0xff]
    %v45 = vld [vmem:[%s2] sm:$0xff]
    %v46 = vmul.f32 %v44, %v44
    %v47 = vmul.f32 %v45, %v45
    %v48 = vadd.f32 %v46, %v47
    %v49 = vmul.f32 %v48, %v48
    %v50 = vmul.f32 %v44, %v46
    %v51 = vmul.f32 %v49, %v50
    %v52 = vmul.f32 %v43, %v51
    %53 = vst [vmem:[#allocation7] sm:$0xff] %v52
    // Predicated region
    $region22: #{tpu_custom_call.1} parent=1 // pred_check
      _
    $region23: #{tpu_custom_call.1} parent=1 // pred_check_branch
      %55 = sbr.rel (0) target = $region25
    $region24: #{tpu_custom_call.1} parent=1 // pred_region
      %s57 = ssub.s32 128, 32
      %58 = vsyncadd [#allocation4], %s57
      %s59 = sshll.u32 [#allocation7], 4
      %s60 = int_to_ptr.vmem [resolvable:$true] %s59
      %65 = dma.vmem_to_hbm [thread:$0]  %s60, 32, %s3, [#allocation4], 32, 32, 2
    $region25: #{tpu_custom_call.1} parent=1 // pred_fallthru
      _
    // Predicated region
    $region26: #{tpu_custom_call.1} parent=1 // pred_check
      _
    $region27: #{tpu_custom_call.1} parent=1 // pred_check_branch
      %67 = sbr.rel (0) target = $region29
    $region28: #{tpu_custom_call.1} parent=1 // pred_region
      %68 = dma.done [#allocation4], 128
    $region29: #{tpu_custom_call.1} parent=1 // pred_fallthru
      _
    %69 = vsyncpa [#allocation3], 1
    %70 = vsyncpa [#allocation6], 1
    %71 = vsyncpa [#allocation4], 1

</llo_original>
